<compile_context>
chip_gen: v7x
topology: tpu7x:2x2x1
jax: 0.10.0
libtpu: 0.0.40
codegen_flags: <defaults>
</compile_context>

<pallas_src>
import jax
import jax.numpy as jnp
from jax.experimental import pallas as pl
from jax.experimental.pallas import tpu as pltpu

LOG_STD_MAX = 2
LOG_STD_MIN = -20


def _round_up(x, m):
    return (x + m - 1) // m * m


# ---------------------------------------------------------------------------
# Kernel bodies
# ---------------------------------------------------------------------------
def _mlp_tile(x_ref, w1_ref, w2_ref, b2_ref):
    """y_T = W2 @ relu(W1aug @ x_aug) + b2 for one (.., TB) batch tile (both matmuls on MXU)."""
    # Layer 1 on the MXU. b1 is already folded in (ones-row in x, bias-column in W1),
    # and K is zero-padded to a tile-aligned size wrapper-side, so this is a single
    # unmasked vmatmul with f32 accumulation.
    h = jnp.dot(w1_ref[...], x_ref[...], preferred_element_type=jnp.float32)  # (hidden, TB)
    h = jnp.maximum(h, 0.0)                                                   # ReLU (VPU)

    # Layer 2 on the MXU: K = hidden = 128, batch on the lane axis -> lane-dense output.
    # The f32 -> operand-dtype cast of h is the only per-tile cast left.
    y = jnp.dot(w2_ref[...], h.astype(w2_ref.dtype),
                preferred_element_type=jnp.float32)                           # (out_dim, TB)
    return y + b2_ref[...]                                                    # b2 is (out_dim, 1), f32


def _decoder_fwd_kernel(x_ref, w1_ref, w2_ref, b2_ref, o_ref):
    o_ref[...] = _mlp_tile(x_ref, w1_ref, w2_ref, b2_ref).astype(o_ref.dtype)


def _decoder_params_kernel(x_ref, w1_ref, w2_ref, b2_ref, mean_ref, std_ref):
    y = _mlp_tile(x_ref, w1_ref, w2_ref, b2_ref)
    p = mean_ref.shape[0]
    # NOTE: if p % 8 != 0 this sublane split forces a relayout copy (efficiency hazard only).
    mean_ref[...] = y[:p, :].astype(mean_ref.dtype)
    log_std = jnp.clip(y[p:, :], LOG_STD_MIN, LOG_STD_MAX)   # cheap VPU select
    std_ref[...] = jnp.exp(log_std).astype(std_ref.dtype)    # exp -> EUP slot


# ---------------------------------------------------------------------------
# Wrappers (layout plumbing + pallas_call)
# ---------------------------------------------------------------------------
def _run_decoder_kernel(kernel_body, out_dims, x, w1, b1, w2, b2, *,
                        tb, use_bf16, feature_major):
    """Shared pallas_call plumbing.  out_dims: leading (feature) dim of each output."""
    B, latent = x.shape
    hidden = w1.shape[0]
    out_dim = w2.shape[0]

    # Lane tile over the batch: multiple of 128, clamped so tiny batches pad to one tile,
    # and split so the grid has >=2 tiles whenever possible (keeps both v7x TCs busy).
    tb = max(128, _round_up(min(tb, max(B, 1)), 128))
    if B > 128 and _round_up(B, tb) // tb < 2:
        tb = _round_up(_round_up(B, 128) // 2, 128)
    Bp = _round_up(B, tb)

    op_dtype = jnp.bfloat16 if use_bf16 else jnp.float32

    # Fold b1 into the layer-1 matmul: append a ones-row to x_T and b1 as a column of W1,
    # then zero-pad the contracting dim K to a tile-aligned size (free, keeps loads unmasked).
    KP = _round_up(latent + 1, 16)
    x_t = jnp.pad(x.T, ((0, 0), (0, Bp - B)))                       # (latent, Bp)
    x_aug = jnp.concatenate([x_t, jnp.ones((1, Bp), x_t.dtype)], axis=0)
    x_aug = jnp.pad(x_aug, ((0, KP - (latent + 1)), (0, 0))).astype(op_dtype)   # (KP, Bp)
    w1_aug = jnp.concatenate([w1, b1.reshape(hidden, 1)], axis=1)
    w1_aug = jnp.pad(w1_aug, ((0, 0), (0, KP - (latent + 1)))).astype(op_dtype) # (hidden, KP)
    w2_c = w2.astype(op_dtype)                                                  # (out_dim, hidden)
    b2_c = b2.reshape(out_dim, 1)                                               # f32, added post-acc

    # Rough double-buffered VMEM footprint; raise the scoped limit so large tb compiles on
    # v5e (16 MiB default) while staying well under v7x's 64 MiB physical VMEM.
    isz = 2 if use_bf16 else 4
    est = (2 * KP * tb * isz                                   # x tiles (double-buffered)
           + 2 * ((hidden * KP + out_dim * hidden) * isz + out_dim * 4)  # resident weights
           + 2 * sum(out_dims) * tb * 4                        # output tiles
           + hidden * tb * (4 + isz))                          # f32 acc + cast h
    vmem_limit = int(min(56 << 20, max(32 << 20, 2 * est)))

    grid_spec = pltpu.PrefetchScalarGridSpec(
        num_scalar_prefetch=0,
        grid=(Bp // tb,),
        in_specs=[
            pl.BlockSpec((KP, tb), lambda i: (0, i)),            # x: tiled over batch (lanes)
            pl.BlockSpec((hidden, KP), lambda i: (0, 0)),        # weights/bias stay VMEM-resident
            pl.BlockSpec((out_dim, hidden), lambda i: (0, 0)),
            pl.BlockSpec((out_dim, 1), lambda i: (0, 0)),
        ],
        out_specs=tuple(pl.BlockSpec((d, tb), lambda i: (0, i)) for d in out_dims),
    )

    outs = pl.pallas_call(
        kernel_body,
        out_shape=tuple(jax.ShapeDtypeStruct((d, Bp), jnp.float32) for d in out_dims),
        grid_spec=grid_spec,
        compiler_params=pltpu.CompilerParams(
            # Batch tiles are independent -> shard the grid across TensorCores (2 on v7x).
            dimension_semantics=("parallel",),
            vmem_limit_bytes=vmem_limit,
        ),
    )(x_aug, w1_aug, w2_c, b2_c)

    if not isinstance(outs, (tuple, list)):
        outs = (outs,)
    if feature_major:
        # Keep the lane-dense (out_dim, B) layout for downstream consumers (no extra
        # HBM round trip for the transpose).
        return tuple(o[:, :B] for o in outs)
    # PyTorch-layout (B, out_dim): strip padding and transpose back.
    return tuple(o[:, :B].T for o in outs)


def decoder_forward(x, w1, b1, w2, b2, *, tb=4096, use_bf16=True, feature_major=False):
    """Decoder.forward: relu(x @ W1.T + b1) @ W2.T + b2.  x: (B, latent) -> (B, 2*input_shape)."""
    (out,) = _run_decoder_kernel(_decoder_fwd_kernel, (w2.shape[0],),
                                 x, w1, b1, w2, b2, tb=tb, use_bf16=use_bf16,
                                 feature_major=feature_major)
    return out


def decoder_get_params(x, w1, b1, w2, b2, *, tb=4096, use_bf16=True,
                       return_log=False, feature_major=False):
    """Decoder.get_params with the split/clip/exp epilogue fused into the kernel."""
    p = w2.shape[0] // 2
    mean, std = _run_decoder_kernel(_decoder_params_kernel, (p, p),
                                    x, w1, b1, w2, b2, tb=tb, use_bf16=use_bf16,
                                    feature_major=feature_major)
    if return_log:
        return mean, jnp.log(std)   # log_std was already clipped in-kernel
    # TODO(synk): torch.distributions.Normal (get_distribution) has no Pallas equivalent;
    # callers build the distribution from (mean, std) host-side.
    return mean, std


def init_decoder_params(key, input_shape, latent_size=3, hidden_size=128):
    """PyTorch-layout params with nn.Linear's U(-1/sqrt(fan_in), 1/sqrt(fan_in)) init."""
    k1, k2, k3, k4 = jax.random.split(key, 4)
    lim1 = 1.0 / jnp.sqrt(jnp.float32(latent_size))
    lim2 = 1.0 / jnp.sqrt(jnp.float32(hidden_size))
    w1 = jax.random.uniform(k1, (hidden_size, latent_size), jnp.float32, -lim1, lim1)
    b1 = jax.random.uniform(k2, (hidden_size,), jnp.float32, -lim1, lim1)
    w2 = jax.random.uniform(k3, (2 * input_shape, hidden_size), jnp.float32, -lim2, lim2)
    b2 = jax.random.uniform(k4, (2 * input_shape,), jnp.float32, -lim2, lim2)
    return w1, b1, w2, b2


if __name__ == "__main__":
    input_shape = 16      # -> output dim 2*16 = 32
    latent_size = 3
    hidden_size = 128
    batch = 4

    key = jax.random.PRNGKey(0)
    kx, kp = jax.random.split(key)
    x = jax.random.normal(kx, (batch, latent_size), jnp.float32)
    w1, b1, w2, b2 = init_decoder_params(kp, input_shape, latent_size, hidden_size)

    # Pure-JAX f32 reference (torch.nn.Linear semantics: y = x @ W.T + b).
    ref = jnp.maximum(x @ w1.T + b1, 0.0) @ w2.T + b2

    # Fused forward (matches Decoder.forward). bf16 MXU path -> loosened tolerance.
    out = jax.block_until_ready(decoder_forward(x, w1, b1, w2, b2))
    assert out.shape == (batch, 2 * input_shape)
    assert jnp.allclose(out, ref, atol=2e-2, rtol=2e-2)

    # Fused get_params (split/clip/exp epilogue in-kernel).
    mean, std = decoder_get_params(x, w1, b1, w2, b2)
    jax.block_until_ready((mean, std))
    ref_mean, ref_log_std = jnp.split(ref, 2, axis=-1)
    ref_std = jnp.exp(jnp.clip(ref_log_std, LOG_STD_MIN, LOG_STD_MAX))
    assert mean.shape == ref_mean.shape and std.shape == ref_std.shape
    assert jnp.allclose(mean, ref_mean, atol=2e-2, rtol=2e-2)
    assert jnp.allclose(std, ref_std, atol=2e-2, rtol=2e-2)

    # Exercise the batch grid: batch not a multiple of the tile size, explicit small tile
    # (3 tiles) and default tile (auto-split to 2 tiles so both v7x TCs get work).
    big_batch = 300
    xb = jax.random.normal(kx, (big_batch, latent_size), jnp.float32)
    refb = jnp.maximum(xb @ w1.T + b1, 0.0) @ w2.T + b2
    outb = jax.block_until_ready(decoder_forward(xb, w1, b1, w2, b2, tb=128))
    assert outb.shape == (big_batch, 2 * input_shape)
    assert jnp.allclose(outb, refb, atol=2e-2, rtol=2e-2)
    outb2 = jax.block_until_ready(decoder_forward(xb, w1, b1, w2, b2))   # default tb=4096
    assert jnp.allclose(outb2, refb, atol=2e-2, rtol=2e-2)

    # Feature-major output path (skips the wrapper-side transpose for large B).
    outb_fm = jax.block_until_ready(
        decoder_forward(xb, w1, b1, w2, b2, feature_major=True))
    assert outb_fm.shape == (2 * input_shape, big_batch)
    assert jnp.allclose(outb_fm, refb.T, atol=2e-2, rtol=2e-2)

    print("KERNEL_OK")
</pallas_src>

<mosaic_0001>
module attributes {stable_mosaic.version = 11 : i64} {
  func.func @_decoder_fwd_kernel(%arg0: i32, %arg1: memref<16x128xbf16, #tpu.memory_space<vmem>>, %arg2: memref<128x16xbf16, #tpu.memory_space<vmem>>, %arg3: memref<32x128xbf16, #tpu.memory_space<vmem>>, %arg4: memref<32x1xf32, #tpu.memory_space<vmem>>, %arg5: memref<32x128xf32, #tpu.memory_space<vmem>>) attributes {dimension_semantics = [#tpu.dimension_semantics<parallel>], iteration_bounds = array<i64: 1>, scalar_prefetch = 0 : i64, scratch_operands = 0 : i64, tpu.core_type = #tpu.core_type<tc>, window_params = [{transform_indices = @transform_0, window_bounds = array<i64: 16, 128>}, {pipeline_mode = #tpu.pipeline_mode<synchronous>, transform_indices = @transform_1, window_bounds = array<i64: 128, 16>}, {pipeline_mode = #tpu.pipeline_mode<synchronous>, transform_indices = @transform_2, window_bounds = array<i64: 32, 128>}, {pipeline_mode = #tpu.pipeline_mode<synchronous>, transform_indices = @transform_3, window_bounds = array<i64: 32, 1>}, {transform_indices = @transform_4, window_bounds = array<i64: 32, 128>}]} {
    %c0 = arith.constant 0 : index
    %c0_0 = arith.constant 0 : index
    %0 = vector.load %arg2[%c0, %c0_0] : memref<128x16xbf16, #tpu.memory_space<vmem>>, vector<128x16xbf16>
    %c0_1 = arith.constant 0 : index
    %c0_2 = arith.constant 0 : index
    %1 = vector.load %arg1[%c0_1, %c0_2] : memref<16x128xbf16, #tpu.memory_space<vmem>>, vector<16x128xbf16>
    %cst = arith.constant dense<0.000000e+00> : vector<128x128xf32>
    %2 = tpu.matmul %0, %1, %cst {dimension_numbers = #tpu.dot_dimension_numbers<[1], [0], [0], [1], [0, 0, 1, 1], [], []>} : vector<128x16xbf16>, vector<16x128xbf16>, vector<128x128xf32> -> vector<128x128xf32>
    %cst_3 = arith.constant 0.000000e+00 : f32
    %3 = vector.broadcast %cst_3 : f32 to vector<128x128xf32>
    %4 = arith.maximumf %2, %3 : vector<128x128xf32>
    %c0_4 = arith.constant 0 : index
    %c0_5 = arith.constant 0 : index
    %5 = vector.load %arg3[%c0_4, %c0_5] : memref<32x128xbf16, #tpu.memory_space<vmem>>, vector<32x128xbf16>
    %6 = arith.truncf %4 : vector<128x128xf32> to vector<128x128xbf16>
    %cst_6 = arith.constant dense<0.000000e+00> : vector<32x128xf32>
    %7 = tpu.matmul %5, %6, %cst_6 {dimension_numbers = #tpu.dot_dimension_numbers<[1], [0], [0], [1], [0, 0, 1, 1], [], []>} : vector<32x128xbf16>, vector<128x128xbf16>, vector<32x128xf32> -> vector<32x128xf32>
    %c0_7 = arith.constant 0 : index
    %c0_8 = arith.constant 0 : index
    %8 = vector.load %arg4[%c0_7, %c0_8] : memref<32x1xf32, #tpu.memory_space<vmem>>, vector<32x1xf32>
    %9 = vector.broadcast %8 : vector<32x1xf32> to vector<32x128xf32>
    %10 = arith.addf %7, %9 : vector<32x128xf32>
    %c0_9 = arith.constant 0 : index
    %c0_10 = arith.constant 0 : index
    %11 = vector.load %arg5[%c0_9, %c0_10] : memref<32x128xf32, #tpu.memory_space<vmem>>, vector<32x128xf32>
    tpu.vector_store %arg5[%c0_9, %c0_10], %10 {strides = array<i32>} : memref<32x128xf32, #tpu.memory_space<vmem>>, vector<32x128xf32>,
    return
  }
  func.func @transform_0(%arg0: i32) -> (i32, i32) {
    %c0_i32 = arith.constant 0 : i32
    %c0_i32_0 = arith.constant 0 : i32
    return %c0_i32, %arg0 : i32, i32
  }
  func.func @transform_1(%arg0: i32) -> (i32, i32) {
    %c0_i32 = arith.constant 0 : i32
    %c0_i32_0 = arith.constant 0 : i32
    %c0_i32_1 = arith.constant 0 : i32
    return %c0_i32, %c0_i32_0 : i32, i32
  }
  func.func @transform_2(%arg0: i32) -> (i32, i32) {
    %c0_i32 = arith.constant 0 : i32
    %c0_i32_0 = arith.constant 0 : i32
    %c0_i32_1 = arith.constant 0 : i32
    return %c0_i32, %c0_i32_0 : i32, i32
  }
  func.func @transform_3(%arg0: i32) -> (i32, i32) {
    %c0_i32 = arith.constant 0 : i32
    %c0_i32_0 = arith.constant 0 : i32
    %c0_i32_1 = arith.constant 0 : i32
    return %c0_i32, %c0_i32_0 : i32, i32
  }
  func.func @transform_4(%arg0: i32) -> (i32, i32) {
    %c0_i32 = arith.constant 0 : i32
    %c0_i32_0 = arith.constant 0 : i32
    return %c0_i32, %arg0 : i32, i32
  }
}

</mosaic_0001>

<llo_original>
// kernel: tpu_custom_call.1
$region0: #{tpu_custom_call.1}
  #allocation0 [shape = 'u32[]', space=smem, size = 0x4, offset = 0x4, fixed_abs, tag = 'smem constant byte address 0x4 - core index']
  #allocation1 [shape = 'u32[144,128]{1,0:T(1,128)}', space=vmem, size = 0x12000, scoped, tag = 'internal scratch']
  %s0 = inlined_call_operand.vmem [shape: bf16[16,128], index: 0, kind: input, shape index: {}]
  %s1 = inlined_call_operand.vmem [shape: bf16[128,16], index: 1, kind: input, shape index: {}]
  %s2 = inlined_call_operand.vmem [shape: bf16[32,128], index: 2, kind: input, shape index: {}]
  %s3 = inlined_call_operand.vmem [shape: f32[32,1], index: 3, kind: input, shape index: {}]
  %s4 = inlined_call_operand.hbm [shape: f32[32,128], index: 4, kind: output, shape index: {}]
  %s5 = sld [smem:[#allocation0]]
  $region26: #{tpu_custom_call.1} parent=0
    _
  %s7 = ssub.s32 1, %s5
  %s8 = scalar_select 0, %s7, %s5
  $region1: #{tpu_custom_call.1} parent=0
    #allocation2 [shape = 'u8[16384]{0}', space=vmem, size = 0x4000, scoped, tag = 'output window, operand 0, single buffered']
    #allocation3 [shape = 's32[1]{0}', space=sflag, size = 0x4, scoped, tag = 'scoped memory for tpu_custom_call.1']
    %9 = vsyncpa [#allocation3], 0
    // Predicated region
    $region2: #{tpu_custom_call.1} parent=1 // pred_check
      _
    $region3: #{tpu_custom_call.1} parent=1 // pred_check_branch
      %11 = sbr.rel (0) target = $region5
    $region4: #{tpu_custom_call.1} parent=1 // pred_region
      _
    $region5: #{tpu_custom_call.1} parent=1 // pred_fallthru
      _
    // Predicated region
    $region6: #{tpu_custom_call.1} parent=1 // pred_check
      _
    $region7: #{tpu_custom_call.1} parent=1 // pred_check_branch
      %13 = sbr.rel (0) target = $region9
    $region8: #{tpu_custom_call.1} parent=1 // pred_region
      _
    $region9: #{tpu_custom_call.1} parent=1 // pred_fallthru
      _
    // Predicated region
    $region10: #{tpu_custom_call.1} parent=1 // pred_check
      _
    $region11: #{tpu_custom_call.1} parent=1 // pred_check_branch
      %15 = sbr.rel (0) target = $region13
    $region12: #{tpu_custom_call.1} parent=1 // pred_region
      _
    $region13: #{tpu_custom_call.1} parent=1 // pred_fallthru
      _
    // Predicated region
    $region14: #{tpu_custom_call.1} parent=1 // pred_check
      _
    $region15: #{tpu_custom_call.1} parent=1 // pred_check_branch
      %17 = sbr.rel (0) target = $region17
    $region16: #{tpu_custom_call.1} parent=1 // pred_region
      _
    $region17: #{tpu_custom_call.1} parent=1 // pred_fallthru
      _
    %v19 = vld [vmem:[%s1] sm:$0xf]
    %v20 = vld [vmem:[%s1 + $0x4] sm:$0xf]
    %v21 = vld [vmem:[%s1 + $0x8] sm:$0xf]
    %v22 = vld [vmem:[%s1 + $0xc] sm:$0xf]
    %v23 = vld [vmem:[%s1 + $0x10] sm:$0xf]
    %v24 = vld [vmem:[%s1 + $0x14] sm:$0xf]
    %v25 = vld [vmem:[%s1 + $0x18] sm:$0xf]
    %v26 = vld [vmem:[%s1 + $0x1c] sm:$0xf]
    %v27 = vld [vmem:[%s1 + $0x20] sm:$0xf]
    %v28 = vld [vmem:[%s1 + $0x24] sm:$0xf]
    %v29 = vld [vmem:[%s1 + $0x28] sm:$0xf]
    %v30 = vld [vmem:[%s1 + $0x2c] sm:$0xf]
    %v31 = vld [vmem:[%s1 + $0x30] sm:$0xf]
    %v32 = vld [vmem:[%s1 + $0x34] sm:$0xf]
    %v33 = vld [vmem:[%s1 + $0x38] sm:$0xf]
    %v34 = vld [vmem:[%s1 + $0x3c] sm:$0xf]
    %v35 = vld [vmem:[%s0] sm:$0xf]
    %v36 = vld [vmem:[%s0 + $0x4] sm:$0xf]
    %v53 = vunpack.c.l.b16 %v19
    %v54 = vunpack.c.l.b16 %v20
    %v55 = vunpack.c.l.b16 %v21
    %v56 = vunpack.c.l.b16 %v22
    %v57 = vunpack.c.l.b16 %v23
    %v58 = vunpack.c.l.b16 %v24
    %v59 = vunpack.c.l.b16 %v25
    %v60 = vunpack.c.l.b16 %v26
    %v61 = vunpack.c.l.b16 %v27
    %v62 = vunpack.c.l.b16 %v28
    %v63 = vunpack.c.l.b16 %v29
    %v64 = vunpack.c.l.b16 %v30
    %v65 = vunpack.c.l.b16 %v31
    %v66 = vunpack.c.l.b16 %v32
    %v67 = vunpack.c.l.b16 %v33
    %v68 = vunpack.c.l.b16 %v34
    %v69 = vpack.c.b16 %v54, %v53
    %v70 = vpack.c.b16 %v56, %v55
    %v71 = vpack.c.b16 %v58, %v57
    %v72 = vpack.c.b16 %v60, %v59
    %v73 = vpack.c.b16 %v62, %v61
    %v74 = vpack.c.b16 %v64, %v63
    %v75 = vpack.c.b16 %v66, %v65
    %v76 = vpack.c.b16 %v68, %v67
    %v79 = vunpack.c.l.b16 %v35
    %v80 = vunpack.c.l.b16 %v36
    %v81 = vpack.c.b16 %v80, %v79
    %vm83 = vcmask 130048
    %v85 = vsel %vm83, %v69, 0
    %v88 = vsel %vm83, %v70, 0
    %v91 = vsel %vm83, %v71, 0
    %v94 = vsel %vm83, %v72, 0
    %v97 = vsel %vm83, %v73, 0
    %v100 = vsel %vm83, %v74, 0
    %v103 = vsel %vm83, %v75, 0
    %v106 = vsel %vm83, %v76, 0
    %108 = vmatprep.subr.bf16.mxu0 0
    %109 = vmatpush1.bf16.msra.mxu0 %v81
    %110 = vmatprep.subr.bf16.mxu0 0
    %111 = vmatpush1.bf16.msra.mxu0 0
    %112 = vmatprep.subr.bf16.mxu0 0
    %113 = vmatpush1.bf16.msra.mxu0 0
    %114 = vmatprep.subr.bf16.mxu0 0
    %115 = vmatpush1.bf16.msra.mxu0 0
    %116 = vmatprep.subr.bf16.mxu0 0
    %117 = vmatpush1.bf16.msra.mxu0 0
    %118 = vmatprep.subr.bf16.mxu0 0
    %119 = vmatpush1.bf16.msra.mxu0 0
    %120 = vmatprep.subr.bf16.mxu0 0
    %121 = vmatpush1.bf16.msra.mxu0 0
    %122 = vmatprep.subr.bf16.mxu0 0
    %123 = vmatpush1.bf16.msra.mxu0 0
    %124 = vmatprep.subr.bf16.mxu0 0
    %125 = vmatpush1.bf16.msra.mxu0 0
    %126 = vmatprep.subr.bf16.mxu0 0
    %127 = vmatpush1.bf16.msra.mxu0 0
    %128 = vmatprep.subr.bf16.mxu0 0
    %129 = vmatpush1.bf16.msra.mxu0 0
    %130 = vmatprep.subr.bf16.mxu0 0
    %131 = vmatpush1.bf16.msra.mxu0 0
    %132 = vmatprep.subr.bf16.mxu0 0
    %133 = vmatpush1.bf16.msra.mxu0 0
    %134 = vmatprep.subr.bf16.mxu0 0
    %135 = vmatpush1.bf16.msra.mxu0 0
    %136 = vmatprep.subr.bf16.mxu0 0
    %137 = vmatpush1.bf16.msra.mxu0 0
    %138 = vmatprep.subr.bf16.mxu0 0
    %139 = vmatpush1.bf16.msra.mxu0 0
    %140 = vmatprep.mubr.bf16.mxu0 0
    %141 = vmatmul.mubr.bf16.gmra.mrb[0].mxu0 %v85
    %v142 = vpop.f32.mrb[0].mxu0
    %v143 = vadd.f32 0.0, %v142
    %v144 = vpop.f32.mrb[0].mxu0
    %v145 = vpop.f32.mrb[0].mxu0
    %v146 = vadd.f32 0.0, %v145
    %v147 = vpop.f32.mrb[0].mxu0
    %148 = vmatprep.mubr.bf16.mxu0 0
    %149 = vmatmul.mubr.bf16.gmra.mrb[0].mxu0 %v88
    %v150 = vpop.f32.mrb[0].mxu0
    %v151 = vadd.f32 0.0, %v150
    %v152 = vpop.f32.mrb[0].mxu0
    %v153 = vpop.f32.mrb[0].mxu0
    %v154 = vadd.f32 0.0, %v153
    %v155 = vpop.f32.mrb[0].mxu0
    %156 = vmatprep.mubr.bf16.mxu0 0
    %157 = vmatmul.mubr.bf16.gmra.mrb[0].mxu0 %v91
    %v158 = vpop.f32.mrb[0].mxu0
    %v159 = vadd.f32 0.0, %v158
    %v160 = vpop.f32.mrb[0].mxu0
    %v161 = vpop.f32.mrb[0].mxu0
    %v162 = vadd.f32 0.0, %v161
    %v163 = vpop.f32.mrb[0].mxu0
    %164 = vmatprep.mubr.bf16.mxu0 0
    %165 = vmatmul.mubr.bf16.gmra.mrb[0].mxu0 %v94
    %v166 = vpop.f32.mrb[0].mxu0
    %v167 = vadd.f32 0.0, %v166
    %v168 = vpop.f32.mrb[0].mxu0
    %v169 = vpop.f32.mrb[0].mxu0
    %v170 = vadd.f32 0.0, %v169
    %v171 = vpop.f32.mrb[0].mxu0
    %172 = vmatprep.mubr.bf16.mxu0 0
    %173 = vmatmul.mubr.bf16.gmra.mrb[0].mxu0 %v97
    %v174 = vpop.f32.mrb[0].mxu0
    %v175 = vadd.f32 0.0, %v174
    %v176 = vpop.f32.mrb[0].mxu0
    %v177 = vpop.f32.mrb[0].mxu0
    %v178 = vadd.f32 0.0, %v177
    %v179 = vpop.f32.mrb[0].mxu0
    %180 = vmatprep.mubr.bf16.mxu0 0
    %181 = vmatmul.mubr.bf16.gmra.mrb[0].mxu0 %v100
    %v182 = vpop.f32.mrb[0].mxu0
    %v183 = vadd.f32 0.0, %v182
    %v184 = vpop.f32.mrb[0].mxu0
    %v185 = vpop.f32.mrb[0].mxu0
    %v186 = vadd.f32 0.0, %v185
    %v187 = vpop.f32.mrb[0].mxu0
    %188 = vmatprep.mubr.bf16.mxu0 0
    %189 = vmatmul.mubr.bf16.gmra.mrb[0].mxu0 %v103
    %v190 = vpop.f32.mrb[0].mxu0
    %v191 = vadd.f32 0.0, %v190
    %v192 = vpop.f32.mrb[0].mxu0
    %v193 = vpop.f32.mrb[0].mxu0
    %v194 = vadd.f32 0.0, %v193
    %v195 = vpop.f32.mrb[0].mxu0
    %196 = vmatprep.mubr.bf16.mxu0 0
    %197 = vmatmul.mubr.bf16.gmra.mrb[0].mxu0 %v106
    %v198 = vpop.f32.mrb[0].mxu0
    %v199 = vadd.f32 0.0, %v198
    %v200 = vpop.f32.mrb[0].mxu0
    %v201 = vpop.f32.mrb[0].mxu0
    %v202 = vadd.f32 0.0, %v201
    %v203 = vpop.f32.mrb[0].mxu0
    %204 = vdwg.mxu0
    %v205 = vmax.f32 %v143, 0.0
    %v206 = vmax.f32 %v146, 0.0
    %v207 = vmax.f32 %v151, 0.0
    %v208 = vmax.f32 %v154, 0.0
    %v209 = vmax.f32 %v159, 0.0
    %v210 = vmax.f32 %v162, 0.0
    %v211 = vmax.f32 %v167, 0.0
    %v212 = vmax.f32 %v170, 0.0
    %v213 = vmax.f32 %v175, 0.0
    %v214 = vmax.f32 %v178, 0.0
    %v215 = vmax.f32 %v183, 0.0
    %v216 = vmax.f32 %v186, 0.0
    %v217 = vmax.f32 %v191, 0.0
    %v218 = vmax.f32 %v194, 0.0
    %v219 = vmax.f32 %v199, 0.0
    %v220 = vmax.f32 %v202, 0.0
    %v221 = vld [vmem:[%s2] sm:$0xf]
    %v222 = vld [vmem:[%s2 + $0x4] sm:$0xf]
    %v223 = vld [vmem:[%s2 + $0x8] sm:$0xf]
    %v224 = vld [vmem:[%s2 + $0xc] sm:$0xf]
    %v225 = vpack.c.bf16 %v206, %v205
    %v226 = vpack.c.bf16 %v208, %v207
    %v227 = vpack.c.bf16 %v210, %v209
    %v228 = vpack.c.bf16 %v212, %v211
    %v229 = vpack.c.bf16 %v214, %v213
    %v230 = vpack.c.bf16 %v216, %v215
    %v231 = vpack.c.bf16 %v218, %v217
    %v232 = vpack.c.bf16 %v220, %v219
    %v233 = vld [vmem:[%s3] sm:$0xff]
    %v234 = vld [vmem:[%s3 + $0x8] sm:$0xff]
    %v235 = vld [vmem:[%s3 + $0x10] sm:$0xff]
    %v236 = vld [vmem:[%s3 + $0x18] sm:$0xff]
    %238 = vset.pattern.permute.xlu0 0
    %239 = vperm.xlu0 %238, %v233
    %v240 = vpop.permute.xlu0 %239
    %243 = vset.pattern.permute.xlu0 0
    %244 = vperm.xlu0 %243, %v234
    %v245 = vpop.permute.xlu0 %244
    %248 = vset.pattern.permute.xlu0 0
    %249 = vperm.xlu0 %248, %v235
    %v250 = vpop.permute.xlu0 %249
    %253 = vset.pattern.permute.xlu0 0
    %254 = vperm.xlu0 %253, %v236
    %v255 = vpop.permute.xlu0 %254
    %v261 = vunpack.c.l.b16 %v221
    %v262 = vunpack.c.l.b16 %v222
    %v263 = vunpack.c.l.b16 %v223
    %v264 = vunpack.c.l.b16 %v224
    %v265 = vpack.c.b16 %v262, %v261
    %v266 = vpack.c.b16 %v264, %v263
    %269 = vmatprep.subr.bf16.mxu0 0
    %270 = vmatpush1.bf16.msra.mxu0 %v225
    %271 = vmatprep.subr.bf16.mxu0 0
    %272 = vmatpush1.bf16.msra.mxu0 %v226
    %273 = vmatprep.subr.bf16.mxu0 0
    %274 = vmatpush1.bf16.msra.mxu0 %v227
    %275 = vmatprep.subr.bf16.mxu0 0
    %276 = vmatpush1.bf16.msra.mxu0 %v228
    %277 = vmatprep.subr.bf16.mxu0 0
    %278 = vmatpush1.bf16.msra.mxu0 %v229
    %279 = vmatprep.subr.bf16.mxu0 0
    %280 = vmatpush1.bf16.msra.mxu0 %v230
    %281 = vmatprep.subr.bf16.mxu0 0
    %282 = vmatpush1.bf16.msra.mxu0 %v231
    %283 = vmatprep.subr.bf16.mxu0 0
    %284 = vmatpush1.bf16.msra.mxu0 %v232
    %285 = vmatprep.subr.bf16.mxu0 0
    %286 = vmatpush1.bf16.msra.mxu0 0
    %287 = vmatprep.subr.bf16.mxu0 0
    %288 = vmatpush1.bf16.msra.mxu0 0
    %289 = vmatprep.subr.bf16.mxu0 0
    %290 = vmatpush1.bf16.msra.mxu0 0
    %291 = vmatprep.subr.bf16.mxu0 0
    %292 = vmatpush1.bf16.msra.mxu0 0
    %293 = vmatprep.subr.bf16.mxu0 0
    %294 = vmatpush1.bf16.msra.mxu0 0
    %295 = vmatprep.subr.bf16.mxu0 0
    %296 = vmatpush1.bf16.msra.mxu0 0
    %297 = vmatprep.subr.bf16.mxu0 0
    %298 = vmatpush1.bf16.msra.mxu0 0
    %299 = vmatprep.subr.bf16.mxu0 0
    %300 = vmatpush1.bf16.msra.mxu0 0
    %301 = vmatprep.mubr.bf16.mxu0 0
    %302 = vmatmul.mubr.bf16.gmra.mrb[0].mxu0 %v265
    %v303 = vpop.f32.mrb[0].mxu0
    %v304 = vadd.f32 %v240, %v303
    %v305 = vpop.f32.mrb[0].mxu0
    %v306 = vpop.f32.mrb[0].mxu0
    %v307 = vadd.f32 %v245, %v306
    %v308 = vpop.f32.mrb[0].mxu0
    %309 = vmatprep.mubr.bf16.mxu0 0
    %310 = vmatmul.mubr.bf16.gmra.mrb[0].mxu0 %v266
    %v311 = vpop.f32.mrb[0].mxu0
    %v312 = vadd.f32 %v250, %v311
    %v313 = vpop.f32.mrb[0].mxu0
    %v314 = vpop.f32.mrb[0].mxu0
    %v315 = vadd.f32 %v255, %v314
    %v316 = vpop.f32.mrb[0].mxu0
    %317 = vdwg.mxu0
    %318 = vst [vmem:[#allocation2] sm:$0xff] %v304
    %319 = vst [vmem:[#allocation2 + $0x8] sm:$0xff] %v307
    %320 = vst [vmem:[#allocation2 + $0x10] sm:$0xff] %v312
    %321 = vst [vmem:[#allocation2 + $0x18] sm:$0xff] %v315
    // Predicated region
    $region18: #{tpu_custom_call.1} parent=1 // pred_check
      _
    $region19: #{tpu_custom_call.1} parent=1 // pred_check_branch
      %323 = sbr.rel (0) target = $region21
    $region20: #{tpu_custom_call.1} parent=1 // pred_region
      %s325 = ssub.s32 512, 512
      %326 = vsyncadd [#allocation3], %s325
      %s327 = sshll.u32 [#allocation2], 4
      %s328 = int_to_ptr.vmem [resolvable:$true] %s327
      %333 = dma.vmem_to_hbm [thread:$0]  %s328, 512, %s4, [#allocation3], 128, 128, 8
    $region21: #{tpu_custom_call.1} parent=1 // pred_fallthru
      _
    // Predicated region
    $region22: #{tpu_custom_call.1} parent=1 // pred_check
      _
    $region23: #{tpu_custom_call.1} parent=1 // pred_check_branch
      %335 = sbr.rel (0) target = $region25
    $region24: #{tpu_custom_call.1} parent=1 // pred_region
      %336 = dma.done [#allocation3], 512
    $region25: #{tpu_custom_call.1} parent=1 // pred_fallthru
      _
    %337 = vsyncpa [#allocation3], 1

</llo_original>
